<compile_context>
chip_gen: v7x
topology: tpu7x:2x2x1
jax: 0.10.0
libtpu: 0.0.40
codegen_flags: <defaults>
</compile_context>

<pallas_src>
import jax
import jax.numpy as jnp
from jax.experimental import pallas as pl
from jax.experimental.pallas import tpu as pltpu

STATE_DIM = 2      # MountainCarContinuous state dim
ACTION_DIM = 1     # MountainCarContinuous action dim
HIDDEN = 256
TB_MAX = 1024      # max batch tile (keeps tb*512 f32 intermediates VMEM-safe on v5e)


def _round_up(x, m):
    return ((x + m - 1) // m) * m


def _cdiv(a, b):
    return -(-a // b)


def _critic_td3_kernel(sa_ref,
                       w14_ref, b14_ref,
                       w2_ref, b2_ref, w5_ref, b5_ref,
                       w3_ref, b3_ref, w6_ref, b6_ref,
                       q_ref):
    """Both TD3 Q-heads for one batch tile.

    Layer 1 of both heads is fused into one (3, 2*HIDDEN) weight.  The hidden
    256x256 matmuls run as bf16 x bf16 on the MXU with f32 accumulation.  The
    N=1 output heads run on the VPU (broadcast mul) + XLU (lane reduce) and
    the (TB, 2) result is written with a single store:
      column 0 = q1, column 1 = q2.
    """
    sa = sa_ref[...]                                           # (TB, 3) f32

    # ---- fused layer 1 of both heads -> (TB, 2*HIDDEN) ----
    h = jnp.dot(sa, w14_ref[...], preferred_element_type=jnp.float32)
    h = jnp.maximum(h + b14_ref[...], 0.0)

    h1 = h[:, :HIDDEN].astype(jnp.bfloat16)   # head-1 activations
    h2 = h[:, HIDDEN:].astype(jnp.bfloat16)   # head-2 activations

    # ---- layer 2 (per head): bf16 MXU matmul, f32 accumulation ----
    h1 = jnp.maximum(
        jnp.dot(h1, w2_ref[...], preferred_element_type=jnp.float32) + b2_ref[...],
        0.0)
    h2 = jnp.maximum(
        jnp.dot(h2, w5_ref[...], preferred_element_type=jnp.float32) + b5_ref[...],
        0.0)

    # ---- layer 3 heads: VPU multiply + lane reduction (MXU stays free) ----
    q1 = jnp.sum(h1 * w3_ref[...], axis=-1, keepdims=True) + b3_ref[...]
    q2 = jnp.sum(h2 * w6_ref[...], axis=-1, keepdims=True) + b6_ref[...]

    # Single store of the (TB, 2) tile.
    q_ref[...] = jnp.concatenate([q1, q2], axis=-1).astype(q_ref.dtype)


def pack_critic_params(params):
    """Pack raw (PyTorch-layout-transposed) params once for the kernel.

    Fuses l1/l4 into a single (in_dim, 2*HIDDEN) layer-1 weight, casts the big
    hidden weights to bf16, and reshapes the (256, 1) head weights into
    (1, 256) rows for the VPU path.
    """
    (w1, b1, w2, b2, w3, b3, w4, b4, w5, b5, w6, b6) = params
    w14 = jnp.concatenate([w1, w4], axis=1).astype(jnp.float32)   # (3, 2H)
    b14 = jnp.concatenate([b1, b4], axis=1).astype(jnp.float32)   # (1, 2H)
    return (
        w14,                                                       # (3, 2H) f32
        b14,                                                       # (1, 2H) f32
        w2.astype(jnp.bfloat16), b2.astype(jnp.float32),           # (H, H), (1, H)
        w5.astype(jnp.bfloat16), b5.astype(jnp.float32),
        w3.reshape(1, HIDDEN).astype(jnp.float32),                 # (1, H) row
        b3.reshape(1, 1).astype(jnp.float32),
        w6.reshape(1, HIDDEN).astype(jnp.float32),
        b6.reshape(1, 1).astype(jnp.float32),
    )


@jax.jit
def critic_td3_forward(state, action, packed):
    """Pallas wrapper mirroring Critic_TD3.forward -> (q1, q2)."""
    (w14, b14, w2, b2, w5, b5, w3, b3, w6, b6) = packed

    sa = jnp.concatenate([state.astype(jnp.float32),
                          action.astype(jnp.float32)], axis=1)     # (B, 3)
    B, in_dim = sa.shape

    # Batch tile: multiple of 8 sublanes, >= 2 grid steps whenever B allows it
    # (so v7x's two TensorCores both get work), capped at TB_MAX.  Pad the
    # batch so the grid has only full tiles; padded rows are sliced off after.
    tb = min(TB_MAX, max(8, _round_up(_cdiv(B, 2), 8)))
    bp = _round_up(B, tb)
    if bp != B:
        sa = jnp.pad(sa, ((0, bp - B), (0, 0)))
    grid = (bp // tb,)

    const = lambda i: (0, 0)          # weights: resident across batch tiles
    weight_specs = [
        pl.BlockSpec(w14.shape, const),
        pl.BlockSpec(b14.shape, const),
        pl.BlockSpec(w2.shape, const),
        pl.BlockSpec(b2.shape, const),
        pl.BlockSpec(w5.shape, const),
        pl.BlockSpec(b5.shape, const),
        pl.BlockSpec(w3.shape, const),
        pl.BlockSpec(b3.shape, const),
        pl.BlockSpec(w6.shape, const),
        pl.BlockSpec(b6.shape, const),
    ]

    flops = 2 * bp * (in_dim * 2 * HIDDEN      # fused layer 1
                      + 2 * HIDDEN * HIDDEN    # layer 2 (both heads)
                      + 2 * HIDDEN)            # layer 3 (both heads)
    bytes_accessed = (
        (w14.size + b14.size + b2.size + b5.size
         + w3.size + w6.size + b3.size + b6.size) * 4
        + (w2.size + w5.size) * 2
        + bp * (in_dim + 2) * 4)

    q12 = pl.pallas_call(
        _critic_td3_kernel,
        out_shape=jax.ShapeDtypeStruct((bp, 2), jnp.float32),
        grid=grid,
        in_specs=[
            pl.BlockSpec((tb, in_dim), lambda i: (i, 0)),
            *weight_specs,
        ],
        out_specs=pl.BlockSpec((tb, 2), lambda i: (i, 0)),
        compiler_params=pltpu.CompilerParams(
            dimension_semantics=("parallel",),
            vmem_limit_bytes=32 * 1024 * 1024),
        cost_estimate=pl.CostEstimate(
            flops=flops, transcendentals=0, bytes_accessed=bytes_accessed),
    )(sa, w14, b14, w2, b2, w5, b5, w3, b3, w6, b6)

    return q12[:B, 0:1], q12[:B, 1:2]


def init_critic_params(key, state_dim=STATE_DIM, action_dim=ACTION_DIM, hidden=HIDDEN):
    """PyTorch nn.Linear-style init: U(-1/sqrt(fan_in), 1/sqrt(fan_in)).
    Weights stored as (in_features, out_features)."""
    in_dim = state_dim + action_dim
    layer_dims = [
        (in_dim, hidden),   # l1
        (hidden, hidden),   # l2
        (hidden, 1),        # l3
        (in_dim, hidden),   # l4
        (hidden, hidden),   # l5
        (hidden, 1),        # l6
    ]
    params = []
    for (fan_in, fan_out) in layer_dims:
        key, kw, kb = jax.random.split(key, 3)
        bound = 1.0 / jnp.sqrt(jnp.float32(fan_in))
        w = jax.random.uniform(kw, (fan_in, fan_out), jnp.float32, -bound, bound)
        b = jax.random.uniform(kb, (1, fan_out), jnp.float32, -bound, bound)
        params.extend([w, b])
    return tuple(params)


def _reference_forward(state, action, params):
    """Pure-JAX f32 reference mirroring the PyTorch module."""
    (w1, b1, w2, b2, w3, b3, w4, b4, w5, b5, w6, b6) = params
    sa = jnp.concatenate([state, action], axis=1)
    h1 = jnp.maximum(sa @ w1 + b1, 0.0)
    h1 = jnp.maximum(h1 @ w2 + b2, 0.0)
    q1 = h1 @ w3 + b3
    h2 = jnp.maximum(sa @ w4 + b4, 0.0)
    h2 = jnp.maximum(h2 @ w5 + b5, 0.0)
    q2 = h2 @ w6 + b6
    return q1, q2


if __name__ == "__main__":
    key = jax.random.PRNGKey(0)
    k_params, k_state, k_action = jax.random.split(key, 3)

    params = init_critic_params(k_params)
    packed = pack_critic_params(params)

    # --- small batch (single grid tile) ---
    batch = 8
    state = jax.random.normal(k_state, (batch, STATE_DIM), jnp.float32)
    action = jax.random.normal(k_action, (batch, ACTION_DIM), jnp.float32)

    q1, q2 = critic_td3_forward(state, action, packed)
    q1 = jax.block_until_ready(q1)
    q2 = jax.block_until_ready(q2)

    q1_ref, q2_ref = _reference_forward(state, action, params)
    assert q1.shape == (batch, 1) and q2.shape == (batch, 1)
    # bf16 hidden weights => loosened tolerance vs the f32 reference.
    assert jnp.allclose(q1, q1_ref, atol=2e-2, rtol=2e-2)
    assert jnp.allclose(q2, q2_ref, atol=2e-2, rtol=2e-2)

    # --- larger batch exercising multi-tile grid + batch padding ---
    batch = 300
    k_state2, k_action2 = jax.random.split(k_state)
    state = jax.random.normal(k_state2, (batch, STATE_DIM), jnp.float32)
    action = jax.random.normal(k_action2, (batch, ACTION_DIM), jnp.float32)

    q1, q2 = critic_td3_forward(state, action, packed)
    q1 = jax.block_until_ready(q1)
    q2 = jax.block_until_ready(q2)

    q1_ref, q2_ref = _reference_forward(state, action, params)
    assert q1.shape == (batch, 1) and q2.shape == (batch, 1)
    assert jnp.allclose(q1, q1_ref, atol=2e-2, rtol=2e-2)
    assert jnp.allclose(q2, q2_ref, atol=2e-2, rtol=2e-2)

    print("KERNEL_OK")
</pallas_src>

<mosaic_0001>
module attributes {stable_mosaic.version = 11 : i64} {
  func.func @_critic_td3_kernel(%arg0: i32, %arg1: memref<8x3xf32, #tpu.memory_space<vmem>>, %arg2: memref<3x512xf32, #tpu.memory_space<vmem>>, %arg3: memref<1x512xf32, #tpu.memory_space<vmem>>, %arg4: memref<256x256xbf16, #tpu.memory_space<vmem>>, %arg5: memref<1x256xf32, #tpu.memory_space<vmem>>, %arg6: memref<256x256xbf16, #tpu.memory_space<vmem>>, %arg7: memref<1x256xf32, #tpu.memory_space<vmem>>, %arg8: memref<1x256xf32, #tpu.memory_space<vmem>>, %arg9: memref<1x1xf32, #tpu.memory_space<vmem>>, %arg10: memref<1x256xf32, #tpu.memory_space<vmem>>, %arg11: memref<1x1xf32, #tpu.memory_space<vmem>>, %arg12: memref<8x2xf32, #tpu.memory_space<vmem>>) attributes {dimension_semantics = [#tpu.dimension_semantics<parallel>], iteration_bounds = array<i64: 1>, scalar_prefetch = 0 : i64, scratch_operands = 0 : i64, tpu.core_type = #tpu.core_type<tc>, window_params = [{transform_indices = @transform_0, window_bounds = array<i64: 8, 3>}, {pipeline_mode = #tpu.pipeline_mode<synchronous>, transform_indices = @transform_1, window_bounds = array<i64: 3, 512>}, {pipeline_mode = #tpu.pipeline_mode<synchronous>, transform_indices = @transform_2, window_bounds = array<i64: 1, 512>}, {pipeline_mode = #tpu.pipeline_mode<synchronous>, transform_indices = @transform_3, window_bounds = array<i64: 256, 256>}, {pipeline_mode = #tpu.pipeline_mode<synchronous>, transform_indices = @transform_4, window_bounds = array<i64: 1, 256>}, {pipeline_mode = #tpu.pipeline_mode<synchronous>, transform_indices = @transform_5, window_bounds = array<i64: 256, 256>}, {pipeline_mode = #tpu.pipeline_mode<synchronous>, transform_indices = @transform_6, window_bounds = array<i64: 1, 256>}, {pipeline_mode = #tpu.pipeline_mode<synchronous>, transform_indices = @transform_7, window_bounds = array<i64: 1, 256>}, {pipeline_mode = #tpu.pipeline_mode<synchronous>, transform_indices = @transform_8, window_bounds = array<i64: 1, 1>}, {pipeline_mode = #tpu.pipeline_mode<synchronous>, transform_indices = @transform_9, window_bounds = array<i64: 1, 256>}, {pipeline_mode = #tpu.pipeline_mode<synchronous>, transform_indices = @transform_10, window_bounds = array<i64: 1, 1>}, {transform_indices = @transform_11, window_bounds = array<i64: 8, 2>}]} {
    %c0 = arith.constant 0 : index
    %c0_0 = arith.constant 0 : index
    %0 = vector.load %arg1[%c0, %c0_0] : memref<8x3xf32, #tpu.memory_space<vmem>>, vector<8x3xf32>
    %c0_1 = arith.constant 0 : index
    %c0_2 = arith.constant 0 : index
    %1 = vector.load %arg2[%c0_1, %c0_2] : memref<3x512xf32, #tpu.memory_space<vmem>>, vector<3x512xf32>
    %cst = arith.constant dense<0.000000e+00> : vector<8x512xf32>
    %2 = tpu.matmul %0, %1, %cst {dimension_numbers = #tpu.dot_dimension_numbers<[1], [0], [0], [1], [0, 0, 1, 1], [], []>} : vector<8x3xf32>, vector<3x512xf32>, vector<8x512xf32> -> vector<8x512xf32>
    %c0_3 = arith.constant 0 : index
    %c0_4 = arith.constant 0 : index
    %3 = vector.load %arg3[%c0_3, %c0_4] : memref<1x512xf32, #tpu.memory_space<vmem>>, vector<1x512xf32>
    %4 = vector.broadcast %3 : vector<1x512xf32> to vector<8x512xf32>
    %5 = arith.addf %2, %4 : vector<8x512xf32>
    %cst_5 = arith.constant 0.000000e+00 : f32
    %6 = vector.broadcast %cst_5 : f32 to vector<8x512xf32>
    %7 = arith.maximumf %5, %6 : vector<8x512xf32>
    %8 = vector.extract_strided_slice %7 {offsets = [0, 0], sizes = [8, 256], strides = [1, 1]} : vector<8x512xf32> to vector<8x256xf32>
    %9 = arith.truncf %8 : vector<8x256xf32> to vector<8x256xbf16>
    %10 = vector.extract_strided_slice %7 {offsets = [0, 256], sizes = [8, 256], strides = [1, 1]} : vector<8x512xf32> to vector<8x256xf32>
    %11 = arith.truncf %10 : vector<8x256xf32> to vector<8x256xbf16>
    %c0_6 = arith.constant 0 : index
    %c0_7 = arith.constant 0 : index
    %12 = vector.load %arg4[%c0_6, %c0_7] : memref<256x256xbf16, #tpu.memory_space<vmem>>, vector<256x256xbf16>
    %cst_8 = arith.constant dense<0.000000e+00> : vector<8x256xf32>
    %13 = tpu.matmul %9, %12, %cst_8 {dimension_numbers = #tpu.dot_dimension_numbers<[1], [0], [0], [1], [0, 0, 1, 1], [], []>} : vector<8x256xbf16>, vector<256x256xbf16>, vector<8x256xf32> -> vector<8x256xf32>
    %c0_9 = arith.constant 0 : index
    %c0_10 = arith.constant 0 : index
    %14 = vector.load %arg5[%c0_9, %c0_10] : memref<1x256xf32, #tpu.memory_space<vmem>>, vector<1x256xf32>
    %15 = vector.broadcast %14 : vector<1x256xf32> to vector<8x256xf32>
    %16 = arith.addf %13, %15 : vector<8x256xf32>
    %cst_11 = arith.constant 0.000000e+00 : f32
    %17 = vector.broadcast %cst_11 : f32 to vector<8x256xf32>
    %18 = arith.maximumf %16, %17 : vector<8x256xf32>
    %c0_12 = arith.constant 0 : index
    %c0_13 = arith.constant 0 : index
    %19 = vector.load %arg6[%c0_12, %c0_13] : memref<256x256xbf16, #tpu.memory_space<vmem>>, vector<256x256xbf16>
    %cst_14 = arith.constant dense<0.000000e+00> : vector<8x256xf32>
    %20 = tpu.matmul %11, %19, %cst_14 {dimension_numbers = #tpu.dot_dimension_numbers<[1], [0], [0], [1], [0, 0, 1, 1], [], []>} : vector<8x256xbf16>, vector<256x256xbf16>, vector<8x256xf32> -> vector<8x256xf32>
    %c0_15 = arith.constant 0 : index
    %c0_16 = arith.constant 0 : index
    %21 = vector.load %arg7[%c0_15, %c0_16] : memref<1x256xf32, #tpu.memory_space<vmem>>, vector<1x256xf32>
    %22 = vector.broadcast %21 : vector<1x256xf32> to vector<8x256xf32>
    %23 = arith.addf %20, %22 : vector<8x256xf32>
    %cst_17 = arith.constant 0.000000e+00 : f32
    %24 = vector.broadcast %cst_17 : f32 to vector<8x256xf32>
    %25 = arith.maximumf %23, %24 : vector<8x256xf32>
    %c0_18 = arith.constant 0 : index
    %c0_19 = arith.constant 0 : index
    %26 = vector.load %arg8[%c0_18, %c0_19] : memref<1x256xf32, #tpu.memory_space<vmem>>, vector<1x256xf32>
    %27 = vector.broadcast %26 : vector<1x256xf32> to vector<8x256xf32>
    %28 = arith.mulf %18, %27 : vector<8x256xf32>
    %cst_20 = arith.constant dense<0.000000e+00> : vector<8xf32>
    %29 = vector.multi_reduction <add>, %28, %cst_20 [1] : vector<8x256xf32> to vector<8xf32>
    %30 = vector.shape_cast %29 : vector<8xf32> to vector<8x1xf32>
    %c0_21 = arith.constant 0 : index
    %c0_22 = arith.constant 0 : index
    %31 = vector.load %arg9[%c0_21, %c0_22] : memref<1x1xf32, #tpu.memory_space<vmem>>, vector<1x1xf32>
    %32 = vector.broadcast %31 : vector<1x1xf32> to vector<8x1xf32>
    %33 = arith.addf %30, %32 : vector<8x1xf32>
    %c0_23 = arith.constant 0 : index
    %c0_24 = arith.constant 0 : index
    %34 = vector.load %arg10[%c0_23, %c0_24] : memref<1x256xf32, #tpu.memory_space<vmem>>, vector<1x256xf32>
    %35 = vector.broadcast %34 : vector<1x256xf32> to vector<8x256xf32>
    %36 = arith.mulf %25, %35 : vector<8x256xf32>
    %cst_25 = arith.constant dense<0.000000e+00> : vector<8xf32>
    %37 = vector.multi_reduction <add>, %36, %cst_25 [1] : vector<8x256xf32> to vector<8xf32>
    %38 = vector.shape_cast %37 : vector<8xf32> to vector<8x1xf32>
    %c0_26 = arith.constant 0 : index
    %c0_27 = arith.constant 0 : index
    %39 = vector.load %arg11[%c0_26, %c0_27] : memref<1x1xf32, #tpu.memory_space<vmem>>, vector<1x1xf32>
    %40 = vector.broadcast %39 : vector<1x1xf32> to vector<8x1xf32>
    %41 = arith.addf %38, %40 : vector<8x1xf32>
    %42 = tpu.concatenate %33, %41 in 1 : vector<8x1xf32>, vector<8x1xf32> -> vector<8x2xf32>
    %c0_28 = arith.constant 0 : index
    %c0_29 = arith.constant 0 : index
    %43 = vector.load %arg12[%c0_28, %c0_29] : memref<8x2xf32, #tpu.memory_space<vmem>>, vector<8x2xf32>
    tpu.vector_store %arg12[%c0_28, %c0_29], %42 {strides = array<i32>} : memref<8x2xf32, #tpu.memory_space<vmem>>, vector<8x2xf32>,
    return
  }
  func.func @transform_0(%arg0: i32) -> (i32, i32) {
    %c0_i32 = arith.constant 0 : i32
    %c0_i32_0 = arith.constant 0 : i32
    return %arg0, %c0_i32 : i32, i32
  }
  func.func @transform_1(%arg0: i32) -> (i32, i32) {
    %c0_i32 = arith.constant 0 : i32
    %c0_i32_0 = arith.constant 0 : i32
    %c0_i32_1 = arith.constant 0 : i32
    return %c0_i32, %c0_i32_0 : i32, i32
  }
  func.func @transform_2(%arg0: i32) -> (i32, i32) {
    %c0_i32 = arith.constant 0 : i32
    %c0_i32_0 = arith.constant 0 : i32
    %c0_i32_1 = arith.constant 0 : i32
    return %c0_i32, %c0_i32_0 : i32, i32
  }
  func.func @transform_3(%arg0: i32) -> (i32, i32) {
    %c0_i32 = arith.constant 0 : i32
    %c0_i32_0 = arith.constant 0 : i32
    %c0_i32_1 = arith.constant 0 : i32
    return %c0_i32, %c0_i32_0 : i32, i32
  }
  func.func @transform_4(%arg0: i32) -> (i32, i32) {
    %c0_i32 = arith.constant 0 : i32
    %c0_i32_0 = arith.constant 0 : i32
    %c0_i32_1 = arith.constant 0 : i32
    return %c0_i32, %c0_i32_0 : i32, i32
  }
  func.func @transform_5(%arg0: i32) -> (i32, i32) {
    %c0_i32 = arith.constant 0 : i32
    %c0_i32_0 = arith.constant 0 : i32
    %c0_i32_1 = arith.constant 0 : i32
    return %c0_i32, %c0_i32_0 : i32, i32
  }
  func.func @transform_6(%arg0: i32) -> (i32, i32) {
    %c0_i32 = arith.constant 0 : i32
    %c0_i32_0 = arith.constant 0 : i32
    %c0_i32_1 = arith.constant 0 : i32
    return %c0_i32, %c0_i32_0 : i32, i32
  }
  func.func @transform_7(%arg0: i32) -> (i32, i32) {
    %c0_i32 = arith.constant 0 : i32
    %c0_i32_0 = arith.constant 0 : i32
    %c0_i32_1 = arith.constant 0 : i32
    return %c0_i32, %c0_i32_0 : i32, i32
  }
  func.func @transform_8(%arg0: i32) -> (i32, i32) {
    %c0_i32 = arith.constant 0 : i32
    %c0_i32_0 = arith.constant 0 : i32
    %c0_i32_1 = arith.constant 0 : i32
    return %c0_i32, %c0_i32_0 : i32, i32
  }
  func.func @transform_9(%arg0: i32) -> (i32, i32) {
    %c0_i32 = arith.constant 0 : i32
    %c0_i32_0 = arith.constant 0 : i32
    %c0_i32_1 = arith.constant 0 : i32
    return %c0_i32, %c0_i32_0 : i32, i32
  }
  func.func @transform_10(%arg0: i32) -> (i32, i32) {
    %c0_i32 = arith.constant 0 : i32
    %c0_i32_0 = arith.constant 0 : i32
    %c0_i32_1 = arith.constant 0 : i32
    return %c0_i32, %c0_i32_0 : i32, i32
  }
  func.func @transform_11(%arg0: i32) -> (i32, i32) {
    %c0_i32 = arith.constant 0 : i32
    %c0_i32_0 = arith.constant 0 : i32
    return %arg0, %c0_i32 : i32, i32
  }
}

</mosaic_0001>

<llo_original>
// kernel: critic_td3_forward.1
$region0: #{critic_td3_forward.1}
  #allocation0 [shape = 'u32[]', space=smem, size = 0x4, offset = 0x4, fixed_abs, tag = 'smem constant byte address 0x4 - core index']
  #allocation1 [shape = 'u32[144,128]{1,0:T(1,128)}', space=vmem, size = 0x12000, scoped, tag = 'internal scratch']
  #allocation2 [shape = 'f32[1,1]{1,0:T(1,128)S(1)}', space=vmem, size = 0x200, scoped, tag = 'scoped memory for critic_td3_forward.1']
  #allocation3 [shape = 'f32[1,1]{1,0:T(1,128)S(1)}', space=vmem, size = 0x200, scoped, tag = 'scoped memory for critic_td3_forward.1']
  %s0 = inlined_call_operand.vmem [shape: f32[8,3], index: 0, kind: input, shape index: {}]
  %s1 = inlined_call_operand.vmem [shape: f32[3,512], index: 1, kind: input, shape index: {}]
  %s2 = inlined_call_operand.vmem [shape: f32[1,512], index: 2, kind: input, shape index: {}]
  %s3 = inlined_call_operand.hbm [shape: bf16[256,256], index: 3, kind: input, shape index: {}]
  %s4 = inlined_call_operand.vmem [shape: f32[1,256], index: 4, kind: input, shape index: {}]
  %s5 = inlined_call_operand.hbm [shape: bf16[256,256], index: 5, kind: input, shape index: {}]
  %s6 = inlined_call_operand.vmem [shape: f32[1,256], index: 6, kind: input, shape index: {}]
  %s7 = inlined_call_operand.vmem [shape: f32[1,256], index: 7, kind: input, shape index: {}]
  %s8 = inlined_call_operand.<no memory space> [shape: f32[1,1], index: 8, kind: input, shape index: {}]
  %s9 = inlined_call_operand.vmem [shape: f32[1,256], index: 9, kind: input, shape index: {}]
  %s10 = inlined_call_operand.<no memory space> [shape: f32[1,1], index: 10, kind: input, shape index: {}]
  %s11 = inlined_call_operand.vmem [shape: f32[8,2], index: 11, kind: output, shape index: {}]
  %s12 = sld [smem:[#allocation0]]
  $region62: #{critic_td3_forward.1} parent=0
    _
  %s14 = ssub.s32 1, %s12
  %s15 = scalar_select 0, %s14, %s12
  %v16 = vstv %s8
  %17 = vst [vmem:[#allocation2] sm:$0x1] %v16
  %v18 = vstv %s10
  %19 = vst [vmem:[#allocation3] sm:$0x1] %v18
  $region1: #{critic_td3_forward.1} parent=0
    #allocation4 [shape = 'u8[131072]{0}', space=vmem, size = 0x20000, scoped, tag = 'input window, operand 3, single buffered']
    #allocation5 [shape = 's32[1]{0}', space=sflag, size = 0x4, scoped, tag = 'scoped memory for critic_td3_forward.1']
    #allocation6 [shape = 'u8[131072]{0}', space=vmem, size = 0x20000, scoped, tag = 'input window, operand 5, single buffered']
    #allocation7 [shape = 's32[1]{0}', space=sflag, size = 0x4, scoped, tag = 'scoped memory for critic_td3_forward.1']
    %20 = vsyncpa [#allocation5], 0
    %21 = vsyncpa [#allocation7], 0
    // Predicated region
    $region2: #{critic_td3_forward.1} parent=1 // pred_check
      _
    $region3: #{critic_td3_forward.1} parent=1 // pred_check_branch
      %23 = sbr.rel (0) target = $region5
    $region4: #{critic_td3_forward.1} parent=1 // pred_region
      _
    $region5: #{critic_td3_forward.1} parent=1 // pred_fallthru
      _
    // Predicated region
    $region6: #{critic_td3_forward.1} parent=1 // pred_check
      _
    $region7: #{critic_td3_forward.1} parent=1 // pred_check_branch
      %25 = sbr.rel (0) target = $region9
    $region8: #{critic_td3_forward.1} parent=1 // pred_region
      _
    $region9: #{critic_td3_forward.1} parent=1 // pred_fallthru
      _
    // Predicated region
    $region10: #{critic_td3_forward.1} parent=1 // pred_check
      _
    $region11: #{critic_td3_forward.1} parent=1 // pred_check_branch
      %27 = sbr.rel (0) target = $region13
    $region12: #{critic_td3_forward.1} parent=1 // pred_region
      _
    $region13: #{critic_td3_forward.1} parent=1 // pred_fallthru
      _
    // Predicated region
    $region14: #{critic_td3_forward.1} parent=1 // pred_check
      _
    $region15: #{critic_td3_forward.1} parent=1 // pred_check_branch
      %29 = sbr.rel (0) target = $region17
    $region16: #{critic_td3_forward.1} parent=1 // pred_region
      %s31 = ssub.s32 4096, 4096
      %32 = vsyncadd [#allocation5], %s31
      %s33 = sshll.u32 [#allocation4], 4
      %s34 = int_to_ptr.vmem [resolvable:$true] %s33
      %39 = dma.hbm_to_vmem [thread:$0]  %s3, 4096, %s34, [#allocation5], 128, 128, 8
    $region17: #{critic_td3_forward.1} parent=1 // pred_fallthru
      _
    // Predicated region
    $region18: #{critic_td3_forward.1} parent=1 // pred_check
      _
    $region19: #{critic_td3_forward.1} parent=1 // pred_check_branch
      %41 = sbr.rel (0) target = $region21
    $region20: #{critic_td3_forward.1} parent=1 // pred_region
      _
    $region21: #{critic_td3_forward.1} parent=1 // pred_fallthru
      _
    // Predicated region
    $region22: #{critic_td3_forward.1} parent=1 // pred_check
      _
    $region23: #{critic_td3_forward.1} parent=1 // pred_check_branch
      %43 = sbr.rel (0) target = $region25
    $region24: #{critic_td3_forward.1} parent=1 // pred_region
      %s45 = ssub.s32 4096, 4096
      %46 = vsyncadd [#allocation7], %s45
      %s47 = sshll.u32 [#allocation6], 4
      %s48 = int_to_ptr.vmem [resolvable:$true] %s47
      %53 = dma.hbm_to_vmem [thread:$0]  %s5, 4096, %s48, [#allocation7], 128, 128, 8
    $region25: #{critic_td3_forward.1} parent=1 // pred_fallthru
      _
    // Predicated region
    $region26: #{critic_td3_forward.1} parent=1 // pred_check
      _
    $region27: #{critic_td3_forward.1} parent=1 // pred_check_branch
      %55 = sbr.rel (0) target = $region29
    $region28: #{critic_td3_forward.1} parent=1 // pred_region
      _
    $region29: #{critic_td3_forward.1} parent=1 // pred_fallthru
      _
    // Predicated region
    $region30: #{critic_td3_forward.1} parent=1 // pred_check
      _
    $region31: #{critic_td3_forward.1} parent=1 // pred_check_branch
      %57 = sbr.rel (0) target = $region33
    $region32: #{critic_td3_forward.1} parent=1 // pred_region
      _
    $region33: #{critic_td3_forward.1} parent=1 // pred_fallthru
      _
    // Predicated region
    $region34: #{critic_td3_forward.1} parent=1 // pred_check
      _
    $region35: #{critic_td3_forward.1} parent=1 // pred_check_branch
      %59 = sbr.rel (0) target = $region37
    $region36: #{critic_td3_forward.1} parent=1 // pred_region
      _
    $region37: #{critic_td3_forward.1} parent=1 // pred_fallthru
      _
    // Predicated region
    $region38: #{critic_td3_forward.1} parent=1 // pred_check
      _
    $region39: #{critic_td3_forward.1} parent=1 // pred_check_branch
      %61 = sbr.rel (0) target = $region41
    $region40: #{critic_td3_forward.1} parent=1 // pred_region
      _
    $region41: #{critic_td3_forward.1} parent=1 // pred_fallthru
      _
    // Predicated region
    $region42: #{critic_td3_forward.1} parent=1 // pred_check
      _
    $region43: #{critic_td3_forward.1} parent=1 // pred_check_branch
      %63 = sbr.rel (0) target = $region45
    $region44: #{critic_td3_forward.1} parent=1 // pred_region
      _
    $region45: #{critic_td3_forward.1} parent=1 // pred_fallthru
      _
    // Predicated region
    $region46: #{critic_td3_forward.1} parent=1 // pred_check
      _
    $region47: #{critic_td3_forward.1} parent=1 // pred_check_branch
      %65 = sbr.rel (0) target = $region49
    $region48: #{critic_td3_forward.1} parent=1 // pred_region
      %66 = dma.done [#allocation5], 4096
    $region49: #{critic_td3_forward.1} parent=1 // pred_fallthru
      _
    // Predicated region
    $region50: #{critic_td3_forward.1} parent=1 // pred_check
      _
    $region51: #{critic_td3_forward.1} parent=1 // pred_check_branch
      %68 = sbr.rel (0) target = $region53
    $region52: #{critic_td3_forward.1} parent=1 // pred_region
      %69 = dma.done [#allocation7], 4096
    $region53: #{critic_td3_forward.1} parent=1 // pred_fallthru
      _
    %v70 = vld [vmem:[%s0] sm:$0xff]
    %v71 = vld [vmem:[%s1] sm:$0x77]
    %v72 = vld [vmem:[%s1 + $0x8] sm:$0x77]
    %v73 = vld [vmem:[%s2] sm:$0xf]
    %v75 = vlaneseq
    %v76 = vshrl.u32 %v75, 7
    %v77 = vsub.s32 0, %v76
    %v78 = vrot.slane %v73, %v77
    %v79 = vlaneseq
    %v80 = vshrl.u32 %v79, 7
    %v81 = vsub.s32 1, %v80
    %v82 = vrot.slane %v73, %v81
    %v83 = vlaneseq
    %v84 = vshrl.u32 %v83, 7
    %v85 = vsub.s32 2, %v84
    %v86 = vrot.slane %v73, %v85
    %v87 = vlaneseq
    %v88 = vshrl.u32 %v87, 7
    %v89 = vsub.s32 3, %v88
    %v90 = vrot.slane %v73, %v89
    %v97 = vcombine.high %v71, %v71
    %v98 = vcombine.high %v72, %v72
    %vm99 = vcmask 23552
    %v101 = vsel %vm99, %v70, 0
    %vm103 = vcmask 1042432
    %v104 = vsel %vm103, %v71, 0
    %v106 = vsel %vm103, %v97, 0
    %v108 = vsel %vm103, %v72, 0
    %v110 = vsel %vm103, %v98, 0
    %112 = vmatprep.subr.mxu0 %v106
    %113 = vmatpush1.msra.mxu0 %v104
    %114 = vmatprep.subr.mxu0 0.0
    %115 = vmatpush1.msra.mxu0 0.0
    %116 = vmatprep.subr.mxu0 0.0
    %117 = vmatpush1.msra.mxu0 0.0
    %118 = vmatprep.subr.mxu0 0.0
    %119 = vmatpush1.msra.mxu0 0.0
    %120 = vmatprep.subr.mxu0 0.0
    %121 = vmatpush1.msra.mxu0 0.0
    %122 = vmatprep.subr.mxu0 0.0
    %123 = vmatpush1.msra.mxu0 0.0
    %124 = vmatprep.subr.mxu0 0.0
    %125 = vmatpush1.msra.mxu0 0.0
    %126 = vmatprep.subr.mxu0 0.0
    %127 = vmatpush1.msra.mxu0 0.0
    %128 = vmatprep.subr.mxu0 0.0
    %129 = vmatpush1.msra.mxu0 0.0
    %130 = vmatprep.subr.mxu0 0.0
    %131 = vmatpush1.msra.mxu0 0.0
    %132 = vmatprep.subr.mxu0 0.0
    %133 = vmatpush1.msra.mxu0 0.0
    %134 = vmatprep.subr.mxu0 0.0
    %135 = vmatpush1.msra.mxu0 0.0
    %136 = vmatprep.subr.mxu0 0.0
    %137 = vmatpush1.msra.mxu0 0.0
    %138 = vmatprep.subr.mxu0 0.0
    %139 = vmatpush1.msra.mxu0 0.0
    %140 = vmatprep.subr.mxu0 0.0
    %141 = vmatpush1.msra.mxu0 0.0
    %142 = vmatprep.subr.mxu0 0.0
    %143 = vmatpush1.msra.mxu0 0.0
    %144 = vmatprep.subr.mxu0 0.0
    %145 = vmatpush1.msra.mxu0 0.0
    %146 = vmatprep.subr.mxu0 0.0
    %147 = vmatpush1.msra.mxu0 0.0
    %148 = vmatprep.subr.mxu0 0.0
    %149 = vmatpush1.msra.mxu0 0.0
    %150 = vmatprep.subr.mxu0 0.0
    %151 = vmatpush1.msra.mxu0 0.0
    %152 = vmatprep.subr.mxu0 0.0
    %153 = vmatpush1.msra.mxu0 0.0
    %154 = vmatprep.subr.mxu0 0.0
    %155 = vmatpush1.msra.mxu0 0.0
    %156 = vmatprep.subr.mxu0 0.0
    %157 = vmatpush1.msra.mxu0 0.0
    %158 = vmatprep.subr.mxu0 0.0
    %159 = vmatpush1.msra.mxu0 0.0
    %160 = vmatprep.subr.mxu0 0.0
    %161 = vmatpush1.msra.mxu0 0.0
    %162 = vmatprep.subr.mxu0 0.0
    %163 = vmatpush1.msra.mxu0 0.0
    %164 = vmatprep.subr.mxu0 0.0
    %165 = vmatpush1.msra.mxu0 0.0
    %166 = vmatprep.subr.mxu0 0.0
    %167 = vmatpush1.msra.mxu0 0.0
    %168 = vmatprep.subr.mxu0 0.0
    %169 = vmatpush1.msra.mxu0 0.0
    %170 = vmatprep.subr.mxu0 0.0
    %171 = vmatpush1.msra.mxu0 0.0
    %172 = vmatprep.subr.mxu0 0.0
    %173 = vmatpush1.msra.mxu0 0.0
    %174 = vmatprep.subr.mxu0 0.0
    %175 = vmatpush1.msra.mxu0 0.0
    %176 = vmatprep.mubr.f32.mxu0 0.0
    %177 = vmatmul.mubr.f32.gmra.mrb[0].mxu0 %v101
    %v178 = vpop.f32.mrb[0].mxu0
    %v179 = vadd.f32 %v78, %v178
    %v180 = vpop.f32.mrb[0].mxu0
    %v181 = vadd.f32 %v82, %v180
    %182 = vdwg.mxu0
    %183 = vmatprep.subr.mxu0 %v110
    %184 = vmatpush1.msra.mxu0 %v108
    %185 = vmatprep.subr.mxu0 0.0
    %186 = vmatpush1.msra.mxu0 0.0
    %187 = vmatprep.subr.mxu0 0.0
    %188 = vmatpush1.msra.mxu0 0.0
    %189 = vmatprep.subr.mxu0 0.0
    %190 = vmatpush1.msra.mxu0 0.0
    %191 = vmatprep.subr.mxu0 0.0
    %192 = vmatpush1.msra.mxu0 0.0
    %193 = vmatprep.subr.mxu0 0.0
    %194 = vmatpush1.msra.mxu0 0.0
    %195 = vmatprep.subr.mxu0 0.0
    %196 = vmatpush1.msra.mxu0 0.0
    %197 = vmatprep.subr.mxu0 0.0
    %198 = vmatpush1.msra.mxu0 0.0
    %199 = vmatprep.subr.mxu0 0.0
    %200 = vmatpush1.msra.mxu0 0.0
    %201 = vmatprep.subr.mxu0 0.0
    %202 = vmatpush1.msra.mxu0 0.0
    %203 = vmatprep.subr.mxu0 0.0
    %204 = vmatpush1.msra.mxu0 0.0
    %205 = vmatprep.subr.mxu0 0.0
    %206 = vmatpush1.msra.mxu0 0.0
    %207 = vmatprep.subr.mxu0 0.0
    %208 = vmatpush1.msra.mxu0 0.0
    %209 = vmatprep.subr.mxu0 0.0
    %210 = vmatpush1.msra.mxu0 0.0
    %211 = vmatprep.subr.mxu0 0.0
    %212 = vmatpush1.msra.mxu0 0.0
    %213 = vmatprep.subr.mxu0 0.0
    %214 = vmatpush1.msra.mxu0 0.0
    %215 = vmatprep.subr.mxu0 0.0
    %216 = vmatpush1.msra.mxu0 0.0
    %217 = vmatprep.subr.mxu0 0.0
    %218 = vmatpush1.msra.mxu0 0.0
    %219 = vmatprep.subr.mxu0 0.0
    %220 = vmatpush1.msra.mxu0 0.0
    %221 = vmatprep.subr.mxu0 0.0
    %222 = vmatpush1.msra.mxu0 0.0
    %223 = vmatprep.subr.mxu0 0.0
    %224 = vmatpush1.msra.mxu0 0.0
    %225 = vmatprep.subr.mxu0 0.0
    %226 = vmatpush1.msra.mxu0 0.0
    %227 = vmatprep.subr.mxu0 0.0
    %228 = vmatpush1.msra.mxu0 0.0
    %229 = vmatprep.subr.mxu0 0.0
    %230 = vmatpush1.msra.mxu0 0.0
    %231 = vmatprep.subr.mxu0 0.0
    %232 = vmatpush1.msra.mxu0 0.0
    %233 = vmatprep.subr.mxu0 0.0
    %234 = vmatpush1.msra.mxu0 0.0
    %235 = vmatprep.subr.mxu0 0.0
    %236 = vmatpush1.msra.mxu0 0.0
    %237 = vmatprep.subr.mxu0 0.0
    %238 = vmatpush1.msra.mxu0 0.0
    %239 = vmatprep.subr.mxu0 0.0
    %240 = vmatpush1.msra.mxu0 0.0
    %241 = vmatprep.subr.mxu0 0.0
    %242 = vmatpush1.msra.mxu0 0.0
    %243 = vmatprep.subr.mxu0 0.0
    %244 = vmatpush1.msra.mxu0 0.0
    %245 = vmatprep.subr.mxu0 0.0
    %246 = vmatpush1.msra.mxu0 0.0
    %247 = vmatprep.mubr.f32.mxu0 0.0
    %248 = vmatmul.mubr.f32.gmra.mrb[0].mxu0 %v101
    %v249 = vpop.f32.mrb[0].mxu0
    %v250 = vadd.f32 %v86, %v249
    %v251 = vpop.f32.mrb[0].mxu0
    %v252 = vadd.f32 %v90, %v251
    %253 = vdwg.mxu0
    %v254 = vmax.f32 %v179, 0.0
    %v255 = vmax.f32 %v181, 0.0
    %v256 = vmax.f32 %v250, 0.0
    %v257 = vmax.f32 %v252, 0.0
    %v258 = vpack.c.bf16 %v254, %v254
    %v259 = vpack.c.bf16 %v255, %v255
    %v260 = vpack.c.bf16 %v256, %v256
    %v261 = vpack.c.bf16 %v257, %v257
    %v262 = vld [vmem:[#allocation4] sm:$0xff]
    %v263 = vld [vmem:[#allocation4 + $0x8] sm:$0xff]
    %v264 = vld [vmem:[#allocation4 + $0x10] sm:$0xff]
    %v265 = vld [vmem:[#allocation4 + $0x18] sm:$0xff]
    %v266 = vld [vmem:[#allocation4 + $0x20] sm:$0xff]
    %v267 = vld [vmem:[#allocation4 + $0x28] sm:$0xff]
    %v268 = vld [vmem:[#allocation4 + $0x30] sm:$0xff]
    %v269 = vld [vmem:[#allocation4 + $0x38] sm:$0xff]
    %v270 = vld [vmem:[#allocation4 + $0x40] sm:$0xff]
    %v271 = vld [vmem:[#allocation4 + $0x48] sm:$0xff]
    %v272 = vld [vmem:[#allocation4 + $0x50] sm:$0xff]
    %v273 = vld [vmem:[#allocation4 + $0x58] sm:$0xff]
    %v274 = vld [vmem:[#allocation4 + $0x60] sm:$0xff]
    %v275 = vld [vmem:[#allocation4 + $0x68] sm:$0xff]
    %v276 = vld [vmem:[#allocation4 + $0x70] sm:$0xff]
    %v277 = vld [vmem:[#allocation4 + $0x78] sm:$0xff]
    %v278 = vld [vmem:[#allocation4 + $0x80] sm:$0xff]
    %v279 = vld [vmem:[#allocation4 + $0x88] sm:$0xff]
    %v280 = vld [vmem:[#allocation4 + $0x90] sm:$0xff]
    %v281 = vld [vmem:[#allocation4 + $0x98] sm:$0xff]
    %v282 = vld [vmem:[#allocation4 + $0xa0] sm:$0xff]
    %v283 = vld [vmem:[#allocation4 + $0xa8] sm:$0xff]
    %v284 = vld [vmem:[#allocation4 + $0xb0] sm:$0xff]
    %v285 = vld [vmem:[#allocation4 + $0xb8] sm:$0xff]
    %v286 = vld [vmem:[#allocation4 + $0xc0] sm:$0xff]
    %v287 = vld [vmem:[#allocation4 + $0xc8] sm:$0xff]
    %v288 = vld [vmem:[#allocation4 + $0xd0] sm:$0xff]
    %v289 = vld [vmem:[#allocation4 + $0xd8] sm:$0xff]
    %v290 = vld [vmem:[#allocation4 + $0xe0] sm:$0xff]
    %v291 = vld [vmem:[#allocation4 + $0xe8] sm:$0xff]
    %v292 = vld [vmem:[#allocation4 + $0xf0] sm:$0xff]
    %v293 = vld [vmem:[#allocation4 + $0xf8] sm:$0xff]
    %v294 = vld [vmem:[%s4] sm:$0x3]
    %v296 = vlaneseq
    %v297 = vshrl.u32 %v296, 7
    %v298 = vsub.s32 0, %v297
    %v299 = vrot.slane %v294, %v298
    %v300 = vlaneseq
    %v301 = vshrl.u32 %v300, 7
    %v302 = vsub.s32 1, %v301
    %v303 = vrot.slane %v294, %v302
    %v338 = vunpack.c.l.b16 %v262
    %v339 = vunpack.c.h.b16 %v262
    %v340 = vunpack.c.l.b16 %v263
    %v341 = vunpack.c.h.b16 %v263
    %v342 = vunpack.c.l.b16 %v264
    %v343 = vunpack.c.h.b16 %v264
    %v344 = vunpack.c.l.b16 %v265
    %v345 = vunpack.c.h.b16 %v265
    %v346 = vunpack.c.l.b16 %v266
    %v347 = vunpack.c.h.b16 %v266
    %v348 = vunpack.c.l.b16 %v267
    %v349 = vunpack.c.h.b16 %v267
    %v350 = vunpack.c.l.b16 %v268
    %v351 = vunpack.c.h.b16 %v268
    %v352 = vunpack.c.l.b16 %v269
    %v353 = vunpack.c.h.b16 %v269
    %v354 = vunpack.c.l.b16 %v270
    %v355 = vunpack.c.h.b16 %v270
    %v356 = vunpack.c.l.b16 %v271
    %v357 = vunpack.c.h.b16 %v271
    %v358 = vunpack.c.l.b16 %v272
    %v359 = vunpack.c.h.b16 %v272
    %v360 = vunpack.c.l.b16 %v273
    %v361 = vunpack.c.h.b16 %v273
    %v362 = vunpack.c.l.b16 %v274
    %v363 = vunpack.c.h.b16 %v274
    %v364 = vunpack.c.l.b16 %v275
    %v365 = vunpack.c.h.b16 %v275
    %v366 = vunpack.c.l.b16 %v276
    %v367 = vunpack.c.h.b16 %v276
    %v368 = vunpack.c.l.b16 %v277
    %v369 = vunpack.c.h.b16 %v277
    %v370 = vunpack.c.l.b16 %v278
    %v371 = vunpack.c.h.b16 %v278
    %v372 = vunpack.c.l.b16 %v279
    %v373 = vunpack.c.h.b16 %v279
    %v374 = vunpack.c.l.b16 %v280
    %v375 = vunpack.c.h.b16 %v280
    %v376 = vunpack.c.l.b16 %v281
    %v377 = vunpack.c.h.b16 %v281
    %v378 = vunpack.c.l.b16 %v282
    %v379 = vunpack.c.h.b16 %v282
    %v380 = vunpack.c.l.b16 %v283
    %v381 = vunpack.c.h.b16 %v283
    %v382 = vunpack.c.l.b16 %v284
    %v383 = vunpack.c.h.b16 %v284
    %v384 = vunpack.c.l.b16 %v285
    %v385 = vunpack.c.h.b16 %v285
    %v386 = vunpack.c.l.b16 %v286
    %v387 = vunpack.c.h.b16 %v286
    %v388 = vunpack.c.l.b16 %v287
    %v389 = vunpack.c.h.b16 %v287
    %v390 = vunpack.c.l.b16 %v288
    %v391 = vunpack.c.h.b16 %v288
    %v392 = vunpack.c.l.b16 %v289
    %v393 = vunpack.c.h.b16 %v289
    %v394 = vunpack.c.l.b16 %v290
    %v395 = vunpack.c.h.b16 %v290
    %v396 = vunpack.c.l.b16 %v291
    %v397 = vunpack.c.h.b16 %v291
    %v398 = vunpack.c.l.b16 %v292
    %v399 = vunpack.c.h.b16 %v292
    %v400 = vunpack.c.l.b16 %v293
    %v401 = vunpack.c.h.b16 %v293
    %v402 = vpack.c.b16 %v340, %v338
    %v403 = vpack.c.b16 %v341, %v339
    %v404 = vpack.c.b16 %v344, %v342
    %v405 = vpack.c.b16 %v345, %v343
    %v406 = vpack.c.b16 %v348, %v346
    %v407 = vpack.c.b16 %v349, %v347
    %v408 = vpack.c.b16 %v352, %v350
    %v409 = vpack.c.b16 %v353, %v351
    %v410 = vpack.c.b16 %v356, %v354
    %v411 = vpack.c.b16 %v357, %v355
    %v412 = vpack.c.b16 %v360, %v358
    %v413 = vpack.c.b16 %v361, %v359
    %v414 = vpack.c.b16 %v364, %v362
    %v415 = vpack.c.b16 %v365, %v363
    %v416 = vpack.c.b16 %v368, %v366
    %v417 = vpack.c.b16 %v369, %v367
    %v418 = vpack.c.b16 %v372, %v370
    %v419 = vpack.c.b16 %v373, %v371
    %v420 = vpack.c.b16 %v376, %v374
    %v421 = vpack.c.b16 %v377, %v375
    %v422 = vpack.c.b16 %v380, %v378
    %v423 = vpack.c.b16 %v381, %v379
    %v424 = vpack.c.b16 %v384, %v382
    %v425 = vpack.c.b16 %v385, %v383
    %v426 = vpack.c.b16 %v388, %v386
    %v427 = vpack.c.b16 %v389, %v387
    %v428 = vpack.c.b16 %v392, %v390
    %v429 = vpack.c.b16 %v393, %v391
    %v430 = vpack.c.b16 %v396, %v394
    %v431 = vpack.c.b16 %v397, %v395
    %v432 = vpack.c.b16 %v400, %v398
    %v433 = vpack.c.b16 %v401, %v399
    %466 = vmatprep.subr.bf16.mxu0 %v403
    %467 = vmatpush1.bf16.msra.mxu0 %v402
    %468 = vmatprep.subr.bf16.mxu0 %v405
    %469 = vmatpush1.bf16.msra.mxu0 %v404
    %470 = vmatprep.subr.bf16.mxu0 %v407
    %471 = vmatpush1.bf16.msra.mxu0 %v406
    %472 = vmatprep.subr.bf16.mxu0 %v409
    %473 = vmatpush1.bf16.msra.mxu0 %v408
    %474 = vmatprep.subr.bf16.mxu0 %v411
    %475 = vmatpush1.bf16.msra.mxu0 %v410
    %476 = vmatprep.subr.bf16.mxu0 %v413
    %477 = vmatpush1.bf16.msra.mxu0 %v412
    %478 = vmatprep.subr.bf16.mxu0 %v415
    %479 = vmatpush1.bf16.msra.mxu0 %v414
    %480 = vmatprep.subr.bf16.mxu0 %v417
    %481 = vmatpush1.bf16.msra.mxu0 %v416
    %482 = vmatprep.subr.bf16.mxu0 %v419
    %483 = vmatpush1.bf16.msra.mxu0 %v418
    %484 = vmatprep.subr.bf16.mxu0 %v421
    %485 = vmatpush1.bf16.msra.mxu0 %v420
    %486 = vmatprep.subr.bf16.mxu0 %v423
    %487 = vmatpush1.bf16.msra.mxu0 %v422
    %488 = vmatprep.subr.bf16.mxu0 %v425
    %489 = vmatpush1.bf16.msra.mxu0 %v424
    %490 = vmatprep.subr.bf16.mxu0 %v427
    %491 = vmatpush1.bf16.msra.mxu0 %v426
    %492 = vmatprep.subr.bf16.mxu0 %v429
    %493 = vmatpush1.bf16.msra.mxu0 %v428
    %494 = vmatprep.subr.bf16.mxu0 %v431
    %495 = vmatpush1.bf16.msra.mxu0 %v430
    %496 = vmatprep.subr.bf16.mxu0 %v433
    %497 = vmatpush1.bf16.msra.mxu0 %v432
    %498 = vmatprep.mubr.bf16.mxu0 %v259
    %499 = vmatmul.mubr.bf16.gmra.mrb[0].mxu0 %v258
    %v500 = vpop.f32.mrb[0].mxu0
    %v501 = vadd.f32 %v299, %v500
    %v502 = vpop.f32.mrb[0].mxu0
    %v503 = vadd.f32 %v303, %v502
    %v504 = vpop.f32.mrb[0].mxu0
    %v505 = vpop.f32.mrb[0].mxu0
    %506 = vdwg.mxu0
    %v507 = vmax.f32 %v501, 0.0
    %v508 = vmax.f32 %v503, 0.0
    %v509 = vld [vmem:[#allocation6] sm:$0xff]
    %v510 = vld [vmem:[#allocation6 + $0x8] sm:$0xff]
    %v511 = vld [vmem:[#allocation6 + $0x10] sm:$0xff]
    %v512 = vld [vmem:[#allocation6 + $0x18] sm:$0xff]
    %v513 = vld [vmem:[#allocation6 + $0x20] sm:$0xff]
    %v514 = vld [vmem:[#allocation6 + $0x28] sm:$0xff]
    %v515 = vld [vmem:[#allocation6 + $0x30] sm:$0xff]
    %v516 = vld [vmem:[#allocation6 + $0x38] sm:$0xff]
    %v517 = vld [vmem:[#allocation6 + $0x40] sm:$0xff]
    %v518 = vld [vmem:[#allocation6 + $0x48] sm:$0xff]
    %v519 = vld [vmem:[#allocation6 + $0x50] sm:$0xff]
    %v520 = vld [vmem:[#allocation6 + $0x58] sm:$0xff]
    %v521 = vld [vmem:[#allocation6 + $0x60] sm:$0xff]
    %v522 = vld [vmem:[#allocation6 + $0x68] sm:$0xff]
    %v523 = vld [vmem:[#allocation6 + $0x70] sm:$0xff]
    %v524 = vld [vmem:[#allocation6 + $0x78] sm:$0xff]
    %v525 = vld [vmem:[#allocation6 + $0x80] sm:$0xff]
    %v526 = vld [vmem:[#allocation6 + $0x88] sm:$0xff]
    %v527 = vld [vmem:[#allocation6 + $0x90] sm:$0xff]
    %v528 = vld [vmem:[#allocation6 + $0x98] sm:$0xff]
    %v529 = vld [vmem:[#allocation6 + $0xa0] sm:$0xff]
    %v530 = vld [vmem:[#allocation6 + $0xa8] sm:$0xff]
    %v531 = vld [vmem:[#allocation6 + $0xb0] sm:$0xff]
    %v532 = vld [vmem:[#allocation6 + $0xb8] sm:$0xff]
    %v533 = vld [vmem:[#allocation6 + $0xc0] sm:$0xff]
    %v534 = vld [vmem:[#allocation6 + $0xc8] sm:$0xff]
    %v535 = vld [vmem:[#allocation6 + $0xd0] sm:$0xff]
    %v536 = vld [vmem:[#allocation6 + $0xd8] sm:$0xff]
    %v537 = vld [vmem:[#allocation6 + $0xe0] sm:$0xff]
    %v538 = vld [vmem:[#allocation6 + $0xe8] sm:$0xff]
    %v539 = vld [vmem:[#allocation6 + $0xf0] sm:$0xff]
    %v540 = vld [vmem:[#allocation6 + $0xf8] sm:$0xff]
    %v541 = vld [vmem:[%s6] sm:$0x3]
    %v543 = vlaneseq
    %v544 = vshrl.u32 %v543, 7
    %v545 = vsub.s32 0, %v544
    %v546 = vrot.slane %v541, %v545
    %v547 = vlaneseq
    %v548 = vshrl.u32 %v547, 7
    %v549 = vsub.s32 1, %v548
    %v550 = vrot.slane %v541, %v549
    %v585 = vunpack.c.l.b16 %v509
    %v586 = vunpack.c.h.b16 %v509
    %v587 = vunpack.c.l.b16 %v510
    %v588 = vunpack.c.h.b16 %v510
    %v589 = vunpack.c.l.b16 %v511
    %v590 = vunpack.c.h.b16 %v511
    %v591 = vunpack.c.l.b16 %v512
    %v592 = vunpack.c.h.b16 %v512
    %v593 = vunpack.c.l.b16 %v513
    %v594 = vunpack.c.h.b16 %v513
    %v595 = vunpack.c.l.b16 %v514
    %v596 = vunpack.c.h.b16 %v514
    %v597 = vunpack.c.l.b16 %v515
    %v598 = vunpack.c.h.b16 %v515
    %v599 = vunpack.c.l.b16 %v516
    %v600 = vunpack.c.h.b16 %v516
    %v601 = vunpack.c.l.b16 %v517
    %v602 = vunpack.c.h.b16 %v517
    %v603 = vunpack.c.l.b16 %v518
    %v604 = vunpack.c.h.b16 %v518
    %v605 = vunpack.c.l.b16 %v519
    %v606 = vunpack.c.h.b16 %v519
    %v607 = vunpack.c.l.b16 %v520
    %v608 = vunpack.c.h.b16 %v520
    %v609 = vunpack.c.l.b16 %v521
    %v610 = vunpack.c.h.b16 %v521
    %v611 = vunpack.c.l.b16 %v522
    %v612 = vunpack.c.h.b16 %v522
    %v613 = vunpack.c.l.b16 %v523
    %v614 = vunpack.c.h.b16 %v523
    %v615 = vunpack.c.l.b16 %v524
    %v616 = vunpack.c.h.b16 %v524
    %v617 = vunpack.c.l.b16 %v525
    %v618 = vunpack.c.h.b16 %v525
    %v619 = vunpack.c.l.b16 %v526
    %v620 = vunpack.c.h.b16 %v526
    %v621 = vunpack.c.l.b16 %v527
    %v622 = vunpack.c.h.b16 %v527
    %v623 = vunpack.c.l.b16 %v528
    %v624 = vunpack.c.h.b16 %v528
    %v625 = vunpack.c.l.b16 %v529
    %v626 = vunpack.c.h.b16 %v529
    %v627 = vunpack.c.l.b16 %v530
    %v628 = vunpack.c.h.b16 %v530
    %v629 = vunpack.c.l.b16 %v531
    %v630 = vunpack.c.h.b16 %v531
    %v631 = vunpack.c.l.b16 %v532
    %v632 = vunpack.c.h.b16 %v532
    %v633 = vunpack.c.l.b16 %v533
    %v634 = vunpack.c.h.b16 %v533
    %v635 = vunpack.c.l.b16 %v534
    %v636 = vunpack.c.h.b16 %v534
    %v637 = vunpack.c.l.b16 %v535
    %v638 = vunpack.c.h.b16 %v535
    %v639 = vunpack.c.l.b16 %v536
    %v640 = vunpack.c.h.b16 %v536
    %v641 = vunpack.c.l.b16 %v537
    %v642 = vunpack.c.h.b16 %v537
    %v643 = vunpack.c.l.b16 %v538
    %v644 = vunpack.c.h.b16 %v538
    %v645 = vunpack.c.l.b16 %v539
    %v646 = vunpack.c.h.b16 %v539
    %v647 = vunpack.c.l.b16 %v540
    %v648 = vunpack.c.h.b16 %v540
    %v649 = vpack.c.b16 %v587, %v585
    %v650 = vpack.c.b16 %v588, %v586
    %v651 = vpack.c.b16 %v591, %v589
    %v652 = vpack.c.b16 %v592, %v590
    %v653 = vpack.c.b16 %v595, %v593
    %v654 = vpack.c.b16 %v596, %v594
    %v655 = vpack.c.b16 %v599, %v597
    %v656 = vpack.c.b16 %v600, %v598
    %v657 = vpack.c.b16 %v603, %v601
    %v658 = vpack.c.b16 %v604, %v602
    %v659 = vpack.c.b16 %v607, %v605
    %v660 = vpack.c.b16 %v608, %v606
    %v661 = vpack.c.b16 %v611, %v609
    %v662 = vpack.c.b16 %v612, %v610
    %v663 = vpack.c.b16 %v615, %v613
    %v664 = vpack.c.b16 %v616, %v614
    %v665 = vpack.c.b16 %v619, %v617
    %v666 = vpack.c.b16 %v620, %v618
    %v667 = vpack.c.b16 %v623, %v621
    %v668 = vpack.c.b16 %v624, %v622
    %v669 = vpack.c.b16 %v627, %v625
    %v670 = vpack.c.b16 %v628, %v626
    %v671 = vpack.c.b16 %v631, %v629
    %v672 = vpack.c.b16 %v632, %v630
    %v673 = vpack.c.b16 %v635, %v633
    %v674 = vpack.c.b16 %v636, %v634
    %v675 = vpack.c.b16 %v639, %v637
    %v676 = vpack.c.b16 %v640, %v638
    %v677 = vpack.c.b16 %v643, %v641
    %v678 = vpack.c.b16 %v644, %v642
    %v679 = vpack.c.b16 %v647, %v645
    %v680 = vpack.c.b16 %v648, %v646
    %713 = vmatprep.subr.bf16.mxu0 %v650
    %714 = vmatpush1.bf16.msra.mxu0 %v649
    %715 = vmatprep.subr.bf16.mxu0 %v652
    %716 = vmatpush1.bf16.msra.mxu0 %v651
    %717 = vmatprep.subr.bf16.mxu0 %v654
    %718 = vmatpush1.bf16.msra.mxu0 %v653
    %719 = vmatprep.subr.bf16.mxu0 %v656
    %720 = vmatpush1.bf16.msra.mxu0 %v655
    %721 = vmatprep.subr.bf16.mxu0 %v658
    %722 = vmatpush1.bf16.msra.mxu0 %v657
    %723 = vmatprep.subr.bf16.mxu0 %v660
    %724 = vmatpush1.bf16.msra.mxu0 %v659
    %725 = vmatprep.subr.bf16.mxu0 %v662
    %726 = vmatpush1.bf16.msra.mxu0 %v661
    %727 = vmatprep.subr.bf16.mxu0 %v664
    %728 = vmatpush1.bf16.msra.mxu0 %v663
    %729 = vmatprep.subr.bf16.mxu0 %v666
    %730 = vmatpush1.bf16.msra.mxu0 %v665
    %731 = vmatprep.subr.bf16.mxu0 %v668
    %732 = vmatpush1.bf16.msra.mxu0 %v667
    %733 = vmatprep.subr.bf16.mxu0 %v670
    %734 = vmatpush1.bf16.msra.mxu0 %v669
    %735 = vmatprep.subr.bf16.mxu0 %v672
    %736 = vmatpush1.bf16.msra.mxu0 %v671
    %737 = vmatprep.subr.bf16.mxu0 %v674
    %738 = vmatpush1.bf16.msra.mxu0 %v673
    %739 = vmatprep.subr.bf16.mxu0 %v676
    %740 = vmatpush1.bf16.msra.mxu0 %v675
    %741 = vmatprep.subr.bf16.mxu0 %v678
    %742 = vmatpush1.bf16.msra.mxu0 %v677
    %743 = vmatprep.subr.bf16.mxu0 %v680
    %744 = vmatpush1.bf16.msra.mxu0 %v679
    %745 = vmatprep.mubr.bf16.mxu0 %v261
    %746 = vmatmul.mubr.bf16.gmra.mrb[0].mxu0 %v260
    %v747 = vpop.f32.mrb[0].mxu0
    %v748 = vadd.f32 %v546, %v747
    %v749 = vpop.f32.mrb[0].mxu0
    %v750 = vadd.f32 %v550, %v749
    %v751 = vpop.f32.mrb[0].mxu0
    %v752 = vpop.f32.mrb[0].mxu0
    %753 = vdwg.mxu0
    %v754 = vmax.f32 %v748, 0.0
    %v755 = vmax.f32 %v750, 0.0
    %v756 = vld [vmem:[%s7] sm:$0x3]
    %v758 = vlaneseq
    %v759 = vshrl.u32 %v758, 7
    %v760 = vsub.s32 0, %v759
    %v761 = vrot.slane %v756, %v760
    %v762 = vlaneseq
    %v763 = vshrl.u32 %v762, 7
    %v764 = vsub.s32 1, %v763
    %v765 = vrot.slane %v756, %v764
    %v768 = vmul.f32 %v507, %v761
    %v769 = vmul.f32 %v508, %v765
    %v770 = vadd.f32 %v768, %v769
    %771 = vadd.xlane.f32.xlu0 %v770
    %v772 = vpop.xlane.xlu0 %771
    %v773 = vld [vmem:[#allocation2] sm:$0x1]
    %v775 = vlaneseq
    %v776 = vshrl.u32 %v775, 7
    %v777 = vsub.s32 0, %v776
    %v778 = vrot.slane %v773, %v777
    %v780 = vadd.f32 %v772, %v778
    %v781 = vld [vmem:[%s9] sm:$0x3]
    %v783 = vlaneseq
    %v784 = vshrl.u32 %v783, 7
    %v785 = vsub.s32 0, %v784
    %v786 = vrot.slane %v781, %v785
    %v787 = vlaneseq
    %v788 = vshrl.u32 %v787, 7
    %v789 = vsub.s32 1, %v788
    %v790 = vrot.slane %v781, %v789
    %v793 = vmul.f32 %v754, %v786
    %v794 = vmul.f32 %v755, %v790
    %v795 = vadd.f32 %v793, %v794
    %796 = vadd.xlane.f32.xlu0 %v795
    %v797 = vpop.xlane.xlu0 %796
    %v798 = vld [vmem:[#allocation3] sm:$0x1]
    %v800 = vlaneseq
    %v801 = vshrl.u32 %v800, 7
    %v802 = vsub.s32 0, %v801
    %v803 = vrot.slane %v798, %v802
    %v805 = vadd.f32 %v797, %v803
    %807 = vrot.lane.b32.xlu0 %v805, 1
    %v808 = vpop.permute.xlu0 %807
    %vm810 = vcmask 7168
    %v811 = vsel %vm810, %v780, %v808
    %vm812 = vcmask 15360
    %813 = vst.msk [vmem:[%s11] sm:$0xff] %vm812, %v811
    // Predicated region
    $region54: #{critic_td3_forward.1} parent=1 // pred_check
      _
    $region55: #{critic_td3_forward.1} parent=1 // pred_check_branch
      %815 = sbr.rel (0) target = $region57
    $region56: #{critic_td3_forward.1} parent=1 // pred_region
      _
    $region57: #{critic_td3_forward.1} parent=1 // pred_fallthru
      _
    // Predicated region
    $region58: #{critic_td3_forward.1} parent=1 // pred_check
      _
    $region59: #{critic_td3_forward.1} parent=1 // pred_check_branch
      %817 = sbr.rel (0) target = $region61
    $region60: #{critic_td3_forward.1} parent=1 // pred_region
      _
    $region61: #{critic_td3_forward.1} parent=1 // pred_fallthru
      _
    %818 = vsyncpa [#allocation5], 1
    %819 = vsyncpa [#allocation7], 1

</llo_original>
